<compile_context>
chip_gen: v7x
topology: tpu7x:2x2x1
jax: 0.10.0
libtpu: 0.0.40
codegen_flags: <defaults>
</compile_context>

<pallas_src>
import functools

import numpy as np
import jax
import jax.numpy as jnp
from jax.experimental import pallas as pl
from jax.experimental.pallas import tpu as pltpu

# ---------------- problem sizes (small, synthetic) ----------------
N_POINTS = 256          # number of input points
IN_DIM   = 3            # xyz
N_FREQ   = 4            # frequency octaves -> enc_dim = 2 * N_FREQ * IN_DIM = 24
HIDDEN   = 64           # MLP hidden width
OUT_DIM  = 4            # MLP output width (e.g. rgb + sigma)
TN       = 128          # points per grid step (lane-axis tile).
                        #   v5e/v6e (1 TC): raise toward N to amortize per-step cost.
                        #   v7x (2 TCs): keep >= 2 grid steps so both cores get work.


def _encoding_mlp_kernel(x_ref, w1_ref, b1_ref, w2_ref, b2_ref, w3_ref, b3_ref,
                         o_ref, *, n_freq):
    """One point-tile in transposed (features x points) layout.

    x_ref : (IN_DIM, TN)          f32
    wK    : (out_feat, in_feat)   bf16   (PyTorch-native layout)
    bK    : (out_feat, 1)         f32
    o_ref : (OUT_DIM, TN)         f32
    """
    x = x_ref[...]                                               # (IN_DIM, TN) f32

    # ---- frequency encoding ----
    # Scale per octave (cheap VPU muls on 3-row blocks), then a single sin and
    # a single cos over the full lane-dense block (EUP).  Row order is
    # [sin f0..f{n-1} | cos f0..f{n-1}] (IN_DIM rows per group); W1's columns
    # are pre-permuted in the wrapper to match this order.
    scaled = jnp.concatenate(
        [jnp.float32(2.0 ** i) * x for i in range(n_freq)], axis=0)      # (n_freq*IN_DIM, TN)
    enc = jnp.concatenate([jnp.sin(scaled), jnp.cos(scaled)], axis=0)    # (2*n_freq*IN_DIM, TN)
    enc = enc.astype(jnp.bfloat16)

    # ---- VanillaMLP (transposed): out^T = W3 @ relu(W2 @ relu(W1 @ enc^T)) ----
    h = jnp.dot(w1_ref[...], enc, preferred_element_type=jnp.float32) + b1_ref[...]
    h = jnp.maximum(h, 0.0).astype(jnp.bfloat16)
    h = jnp.dot(w2_ref[...], h, preferred_element_type=jnp.float32) + b2_ref[...]
    h = jnp.maximum(h, 0.0).astype(jnp.bfloat16)
    out = jnp.dot(w3_ref[...], h, preferred_element_type=jnp.float32) + b3_ref[...]

    o_ref[...] = out.astype(o_ref.dtype)                         # (OUT_DIM, TN) dense store


def _kernel_feature_perm(n_freq, in_dim):
    """kernel enc row k -> reference enc feature index (ref order interleaves sin/cos per freq)."""
    perm = []
    for trig in range(2):                 # 0: sin block, 1: cos block
        for i in range(n_freq):
            for d in range(in_dim):
                perm.append(i * 2 * in_dim + trig * in_dim + d)
    return np.asarray(perm, dtype=np.int32)


def encoding_with_network(x, params, *, n_freq=N_FREQ, tn=TN):
    """x: (N, IN_DIM) f32, params in the (in_features, out_features) x@W layout.
    Returns (N, OUT_DIM) f32."""
    w1, b1, w2, b2, w3, b3 = params
    n, in_dim = x.shape
    enc_dim, hidden = w1.shape
    out_dim = w3.shape[1]
    assert enc_dim == 2 * n_freq * in_dim

    # Pad point count to a multiple of the lane tile (no-op when already aligned).
    n_pad = pl.cdiv(n, tn) * tn
    x_padded = x if n_pad == n else jnp.pad(x, ((0, n_pad - n), (0, 0)))

    # --- layout plumbing (plain XLA ops, outside the kernel) ---
    perm = _kernel_feature_perm(n_freq, in_dim)
    x_t  = x_padded.T                                            # (IN_DIM, N_pad)   f32
    w1_t = jnp.transpose(w1[perm, :]).astype(jnp.bfloat16)       # (HIDDEN, ENC_DIM) bf16
    w2_t = w2.T.astype(jnp.bfloat16)                             # (HIDDEN, HIDDEN)  bf16
    w3_t = w3.T.astype(jnp.bfloat16)                             # (OUT_DIM, HIDDEN) bf16
    b1_t = b1.reshape(hidden, 1)                                 # f32
    b2_t = b2.reshape(hidden, 1)
    b3_t = b3.reshape(out_dim, 1)

    kernel = functools.partial(_encoding_mlp_kernel, n_freq=n_freq)

    full = lambda i: (0, 0)   # weights/biases: one resident block for every grid step
    grid_spec = pltpu.PrefetchScalarGridSpec(
        num_scalar_prefetch=0,
        grid=(n_pad // tn,),
        in_specs=[
            pl.BlockSpec((in_dim, tn), lambda i: (0, i)),        # x^T column tile
            pl.BlockSpec((hidden, enc_dim), full),               # W1 (bf16)
            pl.BlockSpec((hidden, 1), full),                     # b1
            pl.BlockSpec((hidden, hidden), full),                # W2 (bf16)
            pl.BlockSpec((hidden, 1), full),                     # b2
            pl.BlockSpec((out_dim, hidden), full),               # W3 (bf16)
            pl.BlockSpec((out_dim, 1), full),                    # b3
        ],
        out_specs=pl.BlockSpec((out_dim, tn), lambda i: (0, i)),
    )

    flops = 2 * n_pad * (enc_dim * hidden + hidden * hidden + hidden * out_dim)
    transcendentals = n_pad * enc_dim
    bytes_accessed = (n_pad * in_dim * 4                                         # x
                      + (enc_dim * hidden + hidden * hidden + hidden * out_dim) * 2  # bf16 weights
                      + (2 * hidden + out_dim) * 4                               # biases
                      + n_pad * out_dim * 4)                                     # output

    out_t = pl.pallas_call(
        kernel,
        out_shape=jax.ShapeDtypeStruct((out_dim, n_pad), jnp.float32),
        grid_spec=grid_spec,
        compiler_params=pltpu.CompilerParams(
            dimension_semantics=("parallel",)),
        cost_estimate=pl.CostEstimate(
            flops=flops,
            transcendentals=transcendentals,
            bytes_accessed=bytes_accessed),
    )(x_t, w1_t, b1_t, w2_t, b2_t, w3_t, b3_t)

    out = out_t.T                                                # (N_pad, OUT_DIM)
    return out if n_pad == n else out[:n]


# ---------------- pure-JAX reference (for a correctness check) ----------------
def _reference(x, params, n_freq=N_FREQ):
    w1, b1, w2, b2, w3, b3 = params
    feats = []
    for i in range(n_freq):
        f = 2.0 ** i
        feats.append(jnp.sin(f * x))
        feats.append(jnp.cos(f * x))
    enc = jnp.concatenate(feats, axis=-1)
    h = jnp.maximum(enc @ w1 + b1, 0.0)
    h = jnp.maximum(h @ w2 + b2, 0.0)
    return h @ w3 + b3


def _init_params(key):
    enc_dim = 2 * N_FREQ * IN_DIM
    ks = jax.random.split(key, 6)
    scale1 = 1.0 / jnp.sqrt(enc_dim)
    scale2 = 1.0 / jnp.sqrt(HIDDEN)
    w1 = jax.random.uniform(ks[0], (enc_dim, HIDDEN), jnp.float32, -scale1, scale1)
    b1 = jax.random.uniform(ks[1], (1, HIDDEN), jnp.float32, -scale1, scale1)
    w2 = jax.random.uniform(ks[2], (HIDDEN, HIDDEN), jnp.float32, -scale2, scale2)
    b2 = jax.random.uniform(ks[3], (1, HIDDEN), jnp.float32, -scale2, scale2)
    w3 = jax.random.uniform(ks[4], (HIDDEN, OUT_DIM), jnp.float32, -scale2, scale2)
    b3 = jax.random.uniform(ks[5], (1, OUT_DIM), jnp.float32, -scale2, scale2)
    return (w1, b1, w2, b2, w3, b3)


if __name__ == "__main__":
    key = jax.random.PRNGKey(0)
    k_x, k_p = jax.random.split(key)
    x = jax.random.uniform(k_x, (N_POINTS, IN_DIM), jnp.float32, -1.0, 1.0)
    params = _init_params(k_p)

    out = encoding_with_network(x, params)
    out = jax.block_until_ready(out)

    ref = _reference(x, params)
    assert out.shape == (N_POINTS, OUT_DIM)
    # bf16 MXU operands (f32 accumulation) -> slightly looser tolerance than pure-f32.
    assert jnp.allclose(out, ref, atol=5e-2, rtol=5e-2), "mismatch vs reference"

    print("KERNEL_OK")
</pallas_src>

<mosaic_0001>
module attributes {stable_mosaic.version = 11 : i64} {
  func.func @_encoding_mlp_kernel(%arg0: i32, %arg1: memref<3x128xf32, #tpu.memory_space<vmem>>, %arg2: memref<64x24xbf16, #tpu.memory_space<vmem>>, %arg3: memref<64x1xf32, #tpu.memory_space<vmem>>, %arg4: memref<64x64xbf16, #tpu.memory_space<vmem>>, %arg5: memref<64x1xf32, #tpu.memory_space<vmem>>, %arg6: memref<4x64xbf16, #tpu.memory_space<vmem>>, %arg7: memref<4x1xf32, #tpu.memory_space<vmem>>, %arg8: memref<4x128xf32, #tpu.memory_space<vmem>>) attributes {dimension_semantics = [#tpu.dimension_semantics<parallel>], iteration_bounds = array<i64: 2>, scalar_prefetch = 0 : i64, scratch_operands = 0 : i64, tpu.core_type = #tpu.core_type<tc>, window_params = [{transform_indices = @transform_0, window_bounds = array<i64: 3, 128>}, {pipeline_mode = #tpu.pipeline_mode<synchronous>, transform_indices = @transform_1, window_bounds = array<i64: 64, 24>}, {pipeline_mode = #tpu.pipeline_mode<synchronous>, transform_indices = @transform_2, window_bounds = array<i64: 64, 1>}, {pipeline_mode = #tpu.pipeline_mode<synchronous>, transform_indices = @transform_3, window_bounds = array<i64: 64, 64>}, {pipeline_mode = #tpu.pipeline_mode<synchronous>, transform_indices = @transform_4, window_bounds = array<i64: 64, 1>}, {pipeline_mode = #tpu.pipeline_mode<synchronous>, transform_indices = @transform_5, window_bounds = array<i64: 4, 64>}, {pipeline_mode = #tpu.pipeline_mode<synchronous>, transform_indices = @transform_6, window_bounds = array<i64: 4, 1>}, {transform_indices = @transform_7, window_bounds = array<i64: 4, 128>}]} {
    %c0 = arith.constant 0 : index
    %c0_0 = arith.constant 0 : index
    %0 = vector.load %arg1[%c0, %c0_0] : memref<3x128xf32, #tpu.memory_space<vmem>>, vector<3x128xf32>
    %cst = arith.constant 1.000000e+00 : f32
    %1 = vector.broadcast %cst : f32 to vector<3x128xf32>
    %2 = arith.mulf %1, %0 : vector<3x128xf32>
    %cst_1 = arith.constant 2.000000e+00 : f32
    %3 = vector.broadcast %cst_1 : f32 to vector<3x128xf32>
    %4 = arith.mulf %3, %0 : vector<3x128xf32>
    %cst_2 = arith.constant 4.000000e+00 : f32
    %5 = vector.broadcast %cst_2 : f32 to vector<3x128xf32>
    %6 = arith.mulf %5, %0 : vector<3x128xf32>
    %cst_3 = arith.constant 8.000000e+00 : f32
    %7 = vector.broadcast %cst_3 : f32 to vector<3x128xf32>
    %8 = arith.mulf %7, %0 : vector<3x128xf32>
    %9 = tpu.concatenate %2, %4, %6, %8 in 0 : vector<3x128xf32>, vector<3x128xf32>, vector<3x128xf32>, vector<3x128xf32> -> vector<12x128xf32>
    %10 = math.sin %9 : vector<12x128xf32>
    %11 = math.cos %9 : vector<12x128xf32>
    %12 = tpu.concatenate %10, %11 in 0 : vector<12x128xf32>, vector<12x128xf32> -> vector<24x128xf32>
    %13 = arith.truncf %12 : vector<24x128xf32> to vector<24x128xbf16>
    %c0_4 = arith.constant 0 : index
    %c0_5 = arith.constant 0 : index
    %14 = vector.load %arg2[%c0_4, %c0_5] : memref<64x24xbf16, #tpu.memory_space<vmem>>, vector<64x24xbf16>
    %cst_6 = arith.constant dense<0.000000e+00> : vector<64x128xf32>
    %15 = tpu.matmul %14, %13, %cst_6 {dimension_numbers = #tpu.dot_dimension_numbers<[1], [0], [0], [1], [0, 0, 1, 1], [], []>} : vector<64x24xbf16>, vector<24x128xbf16>, vector<64x128xf32> -> vector<64x128xf32>
    %c0_7 = arith.constant 0 : index
    %c0_8 = arith.constant 0 : index
    %16 = vector.load %arg3[%c0_7, %c0_8] : memref<64x1xf32, #tpu.memory_space<vmem>>, vector<64x1xf32>
    %17 = vector.broadcast %16 : vector<64x1xf32> to vector<64x128xf32>
    %18 = arith.addf %15, %17 : vector<64x128xf32>
    %cst_9 = arith.constant 0.000000e+00 : f32
    %19 = vector.broadcast %cst_9 : f32 to vector<64x128xf32>
    %20 = arith.maximumf %18, %19 : vector<64x128xf32>
    %21 = arith.truncf %20 : vector<64x128xf32> to vector<64x128xbf16>
    %c0_10 = arith.constant 0 : index
    %c0_11 = arith.constant 0 : index
    %22 = vector.load %arg4[%c0_10, %c0_11] : memref<64x64xbf16, #tpu.memory_space<vmem>>, vector<64x64xbf16>
    %cst_12 = arith.constant dense<0.000000e+00> : vector<64x128xf32>
    %23 = tpu.matmul %22, %21, %cst_12 {dimension_numbers = #tpu.dot_dimension_numbers<[1], [0], [0], [1], [0, 0, 1, 1], [], []>} : vector<64x64xbf16>, vector<64x128xbf16>, vector<64x128xf32> -> vector<64x128xf32>
    %c0_13 = arith.constant 0 : index
    %c0_14 = arith.constant 0 : index
    %24 = vector.load %arg5[%c0_13, %c0_14] : memref<64x1xf32, #tpu.memory_space<vmem>>, vector<64x1xf32>
    %25 = vector.broadcast %24 : vector<64x1xf32> to vector<64x128xf32>
    %26 = arith.addf %23, %25 : vector<64x128xf32>
    %cst_15 = arith.constant 0.000000e+00 : f32
    %27 = vector.broadcast %cst_15 : f32 to vector<64x128xf32>
    %28 = arith.maximumf %26, %27 : vector<64x128xf32>
    %29 = arith.truncf %28 : vector<64x128xf32> to vector<64x128xbf16>
    %c0_16 = arith.constant 0 : index
    %c0_17 = arith.constant 0 : index
    %30 = vector.load %arg6[%c0_16, %c0_17] : memref<4x64xbf16, #tpu.memory_space<vmem>>, vector<4x64xbf16>
    %cst_18 = arith.constant dense<0.000000e+00> : vector<4x128xf32>
    %31 = tpu.matmul %30, %29, %cst_18 {dimension_numbers = #tpu.dot_dimension_numbers<[1], [0], [0], [1], [0, 0, 1, 1], [], []>} : vector<4x64xbf16>, vector<64x128xbf16>, vector<4x128xf32> -> vector<4x128xf32>
    %c0_19 = arith.constant 0 : index
    %c0_20 = arith.constant 0 : index
    %32 = vector.load %arg7[%c0_19, %c0_20] : memref<4x1xf32, #tpu.memory_space<vmem>>, vector<4x1xf32>
    %33 = vector.broadcast %32 : vector<4x1xf32> to vector<4x128xf32>
    %34 = arith.addf %31, %33 : vector<4x128xf32>
    %c0_21 = arith.constant 0 : index
    %c0_22 = arith.constant 0 : index
    %35 = vector.load %arg8[%c0_21, %c0_22] : memref<4x128xf32, #tpu.memory_space<vmem>>, vector<4x128xf32>
    tpu.vector_store %arg8[%c0_21, %c0_22], %34 {strides = array<i32>} : memref<4x128xf32, #tpu.memory_space<vmem>>, vector<4x128xf32>,
    return
  }
  func.func @transform_0(%arg0: i32) -> (i32, i32) {
    %c0_i32 = arith.constant 0 : i32
    %c0_i32_0 = arith.constant 0 : i32
    return %c0_i32, %arg0 : i32, i32
  }
  func.func @transform_1(%arg0: i32) -> (i32, i32) {
    %c0_i32 = arith.constant 0 : i32
    %c0_i32_0 = arith.constant 0 : i32
    %c0_i32_1 = arith.constant 0 : i32
    return %c0_i32, %c0_i32_0 : i32, i32
  }
  func.func @transform_2(%arg0: i32) -> (i32, i32) {
    %c0_i32 = arith.constant 0 : i32
    %c0_i32_0 = arith.constant 0 : i32
    %c0_i32_1 = arith.constant 0 : i32
    return %c0_i32, %c0_i32_0 : i32, i32
  }
  func.func @transform_3(%arg0: i32) -> (i32, i32) {
    %c0_i32 = arith.constant 0 : i32
    %c0_i32_0 = arith.constant 0 : i32
    %c0_i32_1 = arith.constant 0 : i32
    return %c0_i32, %c0_i32_0 : i32, i32
  }
  func.func @transform_4(%arg0: i32) -> (i32, i32) {
    %c0_i32 = arith.constant 0 : i32
    %c0_i32_0 = arith.constant 0 : i32
    %c0_i32_1 = arith.constant 0 : i32
    return %c0_i32, %c0_i32_0 : i32, i32
  }
  func.func @transform_5(%arg0: i32) -> (i32, i32) {
    %c0_i32 = arith.constant 0 : i32
    %c0_i32_0 = arith.constant 0 : i32
    %c0_i32_1 = arith.constant 0 : i32
    return %c0_i32, %c0_i32_0 : i32, i32
  }
  func.func @transform_6(%arg0: i32) -> (i32, i32) {
    %c0_i32 = arith.constant 0 : i32
    %c0_i32_0 = arith.constant 0 : i32
    %c0_i32_1 = arith.constant 0 : i32
    return %c0_i32, %c0_i32_0 : i32, i32
  }
  func.func @transform_7(%arg0: i32) -> (i32, i32) {
    %c0_i32 = arith.constant 0 : i32
    %c0_i32_0 = arith.constant 0 : i32
    return %c0_i32, %arg0 : i32, i32
  }
}

</mosaic_0001>

<llo_original>
// kernel: tpu_custom_call.1
$region0: #{tpu_custom_call.1}
  #allocation0 [shape = 'u32[]', space=smem, size = 0x4, offset = 0x4, fixed_abs, tag = 'smem constant byte address 0x4 - core index']
  #allocation1 [shape = 'u32[144,128]{1,0:T(1,128)}', space=vmem, size = 0x12000, scoped, tag = 'internal scratch']
  %s0 = inlined_call_operand.vmem [shape: f32[3,256], index: 0, kind: input, shape index: {}]
  %s1 = inlined_call_operand.vmem [shape: bf16[64,24], index: 1, kind: input, shape index: {}]
  %s2 = inlined_call_operand.vmem [shape: f32[64,1], index: 2, kind: input, shape index: {}]
  %s3 = inlined_call_operand.vmem [shape: bf16[64,64], index: 3, kind: input, shape index: {}]
  %s4 = inlined_call_operand.vmem [shape: f32[64,1], index: 4, kind: input, shape index: {}]
  %s5 = inlined_call_operand.vmem [shape: bf16[4,64], index: 5, kind: input, shape index: {}]
  %s6 = inlined_call_operand.vmem [shape: f32[4,1], index: 6, kind: input, shape index: {}]
  %s7 = inlined_call_operand.hbm [shape: f32[4,256], index: 7, kind: output, shape index: {}]
  %s8 = sld [smem:[#allocation0]]
  $region61: #{tpu_custom_call.1} parent=0
    _
  %s10 = ssub.s32 1, %s8
  %s11 = scalar_select 0, %s10, %s8
  $region1: #{tpu_custom_call.1} parent=0
    #allocation2 [shape = 'u8[4096]{0}', space=vmem, size = 0x1000, scoped, tag = 'output window, operand 0']
    #allocation3 [shape = 's32[2]{0}', space=sflag, size = 0x8, scoped, tag = 'scoped memory for tpu_custom_call.1']
    %12 = vsyncpa [#allocation3], 0
    %s13 = scalar_lea.sflag [#allocation3], 1
    %14 = vsyncpa %s13, 0
    loop: start=0, step=1, limit=4
    $region2: #{tpu_custom_call.1} parent=1 // loop_pre_header
      _
    $region3: #{tpu_custom_call.1} parent=1 // loop_header
      %s16 = sphi 0, %s20
      %p17 = scmp.ge.s32.totalorder %s16, 4
      %s26 = sphi 0, %s28
      %s29 = sphi 0, %s26
      %s30 = sphi 0, %s29
      %s46 = sphi 0, %s30
      %s50 = sphi 0, %s50
      %s52 = sphi 0, %s50
      %s53 = sphi 0, %s52
      %s67 = sphi 0, %s53
      %s71 = sphi 0, %s71
      %s73 = sphi 0, %s71
      %s74 = sphi 0, %s73
      %s88 = sphi 0, %s74
      %s92 = sphi 0, %s92
      %s94 = sphi 0, %s92
      %s95 = sphi 0, %s94
      %s109 = sphi 0, %s95
      %s113 = sphi 0, %s113
      %s115 = sphi 0, %s113
      %s116 = sphi 0, %s115
      %s130 = sphi 0, %s116
      %s134 = sphi 0, %s134
      %s136 = sphi 0, %s134
      %s137 = sphi 0, %s136
      %s151 = sphi 0, %s137
      %s155 = sphi 0, %s155
      %s157 = sphi 0, %s155
      %s158 = sphi 0, %s157
      %s172 = sphi 0, %s158
      %s178 = sphi 0, %s180
      %s181 = sphi 0, %s178
      %s182 = sphi 0, %s181
      %s198 = sphi 0, %s182
    $region4: #{tpu_custom_call.1} parent=1 // loop_header_branch
      %19 = sbr.rel (%p17) target = $region8
    $region5: #{tpu_custom_call.1} parent=1 // loop_body
      %s21 = ssub.s32 %s16, 1
      %s22 = ssub.s32 %s16, 2
      %s23 = sadd.s32 %s16, 1
      %s24 = ssub.s32 %s16, %s23
      %p25 = scmp.eq.s32.totalorder %s24, 0
      %s27 = sadd.s32 %s26, 1
      %s28 = scalar_select %p25, %s26, %s27
      %p31 = pneg %p25
      %p32 = scmp.eq.s32.totalorder %s16, 1
      %p33 = por %p31, %p32
      %p34 = scmp.ne.s32.totalorder %s26, %s29
      %p35 = scmp.eq.s32.totalorder %s16, 0
      %p36 = por %p34, %p35
      %p37 = scmp.ne.s32.totalorder %s26, %s29
      %p38 = scmp.eq.s32.totalorder %s21, 1
      %p39 = por %p37, %p38
      %p40 = scmp.ne.s32.totalorder %s29, %s30
      %p41 = scmp.eq.s32.totalorder %s21, 0
      %p42 = por %p40, %p41
      %p43 = scmp.ne.s32.totalorder %s29, %s30
      %p44 = scmp.eq.s32.totalorder %s22, 1
      %p45 = por %p43, %p44
      %p47 = scmp.ne.s32.totalorder %s30, %s46
      %p48 = scmp.eq.s32.totalorder %s22, 0
      %p49 = por %p47, %p48
      %s51 = sadd.s32 %s50, 1
      %p54 = scmp.eq.s32.totalorder %s16, 1
      %p55 = scmp.ne.s32.totalorder %s50, %s52
      %p56 = scmp.eq.s32.totalorder %s16, 0
      %p57 = por %p55, %p56
      %p58 = scmp.ne.s32.totalorder %s50, %s52
      %p59 = scmp.eq.s32.totalorder %s21, 1
      %p60 = por %p58, %p59
      %p61 = scmp.ne.s32.totalorder %s52, %s53
      %p62 = scmp.eq.s32.totalorder %s21, 0
      %p63 = por %p61, %p62
      %p64 = scmp.ne.s32.totalorder %s52, %s53
      %p65 = scmp.eq.s32.totalorder %s22, 1
      %p66 = por %p64, %p65
      %p68 = scmp.ne.s32.totalorder %s53, %s67
      %p69 = scmp.eq.s32.totalorder %s22, 0
      %p70 = por %p68, %p69
      %s72 = sadd.s32 %s71, 1
      %p75 = scmp.eq.s32.totalorder %s16, 1
      %p76 = scmp.ne.s32.totalorder %s71, %s73
      %p77 = scmp.eq.s32.totalorder %s16, 0
      %p78 = por %p76, %p77
      %p79 = scmp.ne.s32.totalorder %s71, %s73
      %p80 = scmp.eq.s32.totalorder %s21, 1
      %p81 = por %p79, %p80
      %p82 = scmp.ne.s32.totalorder %s73, %s74
      %p83 = scmp.eq.s32.totalorder %s21, 0
      %p84 = por %p82, %p83
      %p85 = scmp.ne.s32.totalorder %s73, %s74
      %p86 = scmp.eq.s32.totalorder %s22, 1
      %p87 = por %p85, %p86
      %p89 = scmp.ne.s32.totalorder %s74, %s88
      %p90 = scmp.eq.s32.totalorder %s22, 0
      %p91 = por %p89, %p90
      %s93 = sadd.s32 %s92, 1
      %p96 = scmp.eq.s32.totalorder %s16, 1
      %p97 = scmp.ne.s32.totalorder %s92, %s94
      %p98 = scmp.eq.s32.totalorder %s16, 0
      %p99 = por %p97, %p98
      %p100 = scmp.ne.s32.totalorder %s92, %s94
      %p101 = scmp.eq.s32.totalorder %s21, 1
      %p102 = por %p100, %p101
      %p103 = scmp.ne.s32.totalorder %s94, %s95
      %p104 = scmp.eq.s32.totalorder %s21, 0
      %p105 = por %p103, %p104
      %p106 = scmp.ne.s32.totalorder %s94, %s95
      %p107 = scmp.eq.s32.totalorder %s22, 1
      %p108 = por %p106, %p107
      %p110 = scmp.ne.s32.totalorder %s95, %s109
      %p111 = scmp.eq.s32.totalorder %s22, 0
      %p112 = por %p110, %p111
      %s114 = sadd.s32 %s113, 1
      %p117 = scmp.eq.s32.totalorder %s16, 1
      %p118 = scmp.ne.s32.totalorder %s113, %s115
      %p119 = scmp.eq.s32.totalorder %s16, 0
      %p120 = por %p118, %p119
      %p121 = scmp.ne.s32.totalorder %s113, %s115
      %p122 = scmp.eq.s32.totalorder %s21, 1
      %p123 = por %p121, %p122
      %p124 = scmp.ne.s32.totalorder %s115, %s116
      %p125 = scmp.eq.s32.totalorder %s21, 0
      %p126 = por %p124, %p125
      %p127 = scmp.ne.s32.totalorder %s115, %s116
      %p128 = scmp.eq.s32.totalorder %s22, 1
      %p129 = por %p127, %p128
      %p131 = scmp.ne.s32.totalorder %s116, %s130
      %p132 = scmp.eq.s32.totalorder %s22, 0
      %p133 = por %p131, %p132
      %s135 = sadd.s32 %s134, 1
      %p138 = scmp.eq.s32.totalorder %s16, 1
      %p139 = scmp.ne.s32.totalorder %s134, %s136
      %p140 = scmp.eq.s32.totalorder %s16, 0
      %p141 = por %p139, %p140
      %p142 = scmp.ne.s32.totalorder %s134, %s136
      %p143 = scmp.eq.s32.totalorder %s21, 1
      %p144 = por %p142, %p143
      %p145 = scmp.ne.s32.totalorder %s136, %s137
      %p146 = scmp.eq.s32.totalorder %s21, 0
      %p147 = por %p145, %p146
      %p148 = scmp.ne.s32.totalorder %s136, %s137
      %p149 = scmp.eq.s32.totalorder %s22, 1
      %p150 = por %p148, %p149
      %p152 = scmp.ne.s32.totalorder %s137, %s151
      %p153 = scmp.eq.s32.totalorder %s22, 0
      %p154 = por %p152, %p153
      %s156 = sadd.s32 %s155, 1
      %p159 = scmp.eq.s32.totalorder %s16, 1
      %p160 = scmp.ne.s32.totalorder %s155, %s157
      %p161 = scmp.eq.s32.totalorder %s16, 0
      %p162 = por %p160, %p161
      %p163 = scmp.ne.s32.totalorder %s155, %s157
      %p164 = scmp.eq.s32.totalorder %s21, 1
      %p165 = por %p163, %p164
      %p166 = scmp.ne.s32.totalorder %s157, %s158
      %p167 = scmp.eq.s32.totalorder %s21, 0
      %p168 = por %p166, %p167
      %p169 = scmp.ne.s32.totalorder %s157, %s158
      %p170 = scmp.eq.s32.totalorder %s22, 1
      %p171 = por %p169, %p170
      %p173 = scmp.ne.s32.totalorder %s158, %s172
      %p174 = scmp.eq.s32.totalorder %s22, 0
      %p175 = por %p173, %p174
      %s176 = ssub.s32 %s16, %s23
      %p177 = scmp.eq.s32.totalorder %s176, 0
      %s179 = sadd.s32 %s178, 1
      %s180 = scalar_select %p177, %s178, %s179
      %p183 = pneg %p177
      %p184 = scmp.eq.s32.totalorder %s16, 1
      %p185 = por %p183, %p184
      %p186 = scmp.ne.s32.totalorder %s178, %s181
      %p187 = scmp.eq.s32.totalorder %s16, 0
      %p188 = por %p186, %p187
      %p189 = scmp.ne.s32.totalorder %s178, %s181
      %p190 = scmp.eq.s32.totalorder %s21, 1
      %p191 = por %p189, %p190
      %p192 = scmp.ne.s32.totalorder %s181, %s182
      %p193 = scmp.eq.s32.totalorder %s21, 0
      %p194 = por %p192, %p193
      %p195 = scmp.ne.s32.totalorder %s181, %s182
      %p196 = scmp.eq.s32.totalorder %s22, 1
      %p197 = por %p195, %p196
      %p199 = scmp.ne.s32.totalorder %s182, %s198
      %p200 = scmp.eq.s32.totalorder %s22, 0
      %p201 = por %p199, %p200
      %p202 = scmp.le.s32.totalorder 1, %s16
      %p203 = scmp.lt.s32.totalorder %s16, 3
      %p204 = pnand %p202, %p203
      %p205 = pneg %p204
      // Predicated region
      $region9: #{tpu_custom_call.1} parent=5 // pred_check
        _
      $region10: #{tpu_custom_call.1} parent=5 // pred_check_branch
        %207 = sbr.rel (%p204) target = $region12
      $region11: #{tpu_custom_call.1} parent=5 // pred_region
        %s208 = ssub.s32 %s16, 1
        // Predicated region
        $region13: #{tpu_custom_call.1} parent=11 // pred_check
          %p209 = pneg %p63
        $region14: #{tpu_custom_call.1} parent=11 // pred_check_branch
          %211 = sbr.rel (%p209) target = $region16
        $region15: #{tpu_custom_call.1} parent=11 // pred_region
          _
        $region16: #{tpu_custom_call.1} parent=11 // pred_fallthru
          _
        // Predicated region
        $region17: #{tpu_custom_call.1} parent=11 // pred_check
          %p212 = pneg %p84
        $region18: #{tpu_custom_call.1} parent=11 // pred_check_branch
          %214 = sbr.rel (%p212) target = $region20
        $region19: #{tpu_custom_call.1} parent=11 // pred_region
          _
        $region20: #{tpu_custom_call.1} parent=11 // pred_fallthru
          _
        // Predicated region
        $region21: #{tpu_custom_call.1} parent=11 // pred_check
          %p215 = pneg %p105
        $region22: #{tpu_custom_call.1} parent=11 // pred_check_branch
          %217 = sbr.rel (%p215) target = $region24
        $region23: #{tpu_custom_call.1} parent=11 // pred_region
          _
        $region24: #{tpu_custom_call.1} parent=11 // pred_fallthru
          _
        // Predicated region
        $region25: #{tpu_custom_call.1} parent=11 // pred_check
          %p218 = pneg %p126
        $region26: #{tpu_custom_call.1} parent=11 // pred_check_branch
          %220 = sbr.rel (%p218) target = $region28
        $region27: #{tpu_custom_call.1} parent=11 // pred_region
          _
        $region28: #{tpu_custom_call.1} parent=11 // pred_fallthru
          _
        // Predicated region
        $region29: #{tpu_custom_call.1} parent=11 // pred_check
          %p221 = pneg %p147
        $region30: #{tpu_custom_call.1} parent=11 // pred_check_branch
          %223 = sbr.rel (%p221) target = $region32
        $region31: #{tpu_custom_call.1} parent=11 // pred_region
          _
        $region32: #{tpu_custom_call.1} parent=11 // pred_fallthru
          _
        // Predicated region
        $region33: #{tpu_custom_call.1} parent=11 // pred_check
          %p224 = pneg %p168
        $region34: #{tpu_custom_call.1} parent=11 // pred_check_branch
          %226 = sbr.rel (%p224) target = $region36
        $region35: #{tpu_custom_call.1} parent=11 // pred_region
          _
        $region36: #{tpu_custom_call.1} parent=11 // pred_fallthru
          _
      $region12: #{tpu_custom_call.1} parent=5 // pred_fallthru
        _
      %p227 = scmp.lt.s32.totalorder %s16, 2
      // Predicated region
      $region37: #{tpu_custom_call.1} parent=5 // pred_check
        %p228 = pneg %p227
      $region38: #{tpu_custom_call.1} parent=5 // pred_check_branch
        %230 = sbr.rel (%p228) target = $region40
      $region39: #{tpu_custom_call.1} parent=5 // pred_region
        // Predicated region
        $region41: #{tpu_custom_call.1} parent=39 // pred_check
          %p231 = pneg %p36
        $region42: #{tpu_custom_call.1} parent=39 // pred_check_branch
          %233 = sbr.rel (%p231) target = $region44
        $region43: #{tpu_custom_call.1} parent=39 // pred_region
          %p234 = scmp.lt.s32.totalorder %s16, 1
          %s235 = scalar_select %p234, %s16, 1
          %s236 = smul.addr %s235, 4
          %s237 = scalar_lea.vmem %s0, %s236
        $region44: #{tpu_custom_call.1} parent=39 // pred_fallthru
          _
      $region40: #{tpu_custom_call.1} parent=5 // pred_fallthru
        _
      %p238 = scmp.le.s32.totalorder 1, %s16
      %p239 = scmp.lt.s32.totalorder %s16, 3
      %p240 = pnand %p238, %p239
      %p241 = pneg %p240
      // Predicated region
      $region45: #{tpu_custom_call.1} parent=5 // pred_check
        _
      $region46: #{tpu_custom_call.1} parent=5 // pred_check_branch
        %243 = sbr.rel (%p240) target = $region48
      $region47: #{tpu_custom_call.1} parent=5 // pred_region
        %s244 = ssub.s32 %s16, 1
        %p245 = scmp.lt.s32.totalorder %s21, 1
        %s246 = scalar_select %p245, %s21, 1
        %s247 = smul.addr %s246, 4
        %s248 = scalar_lea.vmem %s0, %s247
        %p249 = pneg %p42
        %p250 = pneg %p39
        %p251 = pneg %p63
        %p252 = pneg %p60
        %p253 = pneg %p84
        %p254 = pneg %p81
        %p255 = pneg %p105
        %p256 = pneg %p102
        %p257 = pneg %p126
        %p258 = pneg %p123
        %p259 = pneg %p147
        %p260 = pneg %p144
        %p261 = pneg %p168
        %p262 = pneg %p165
        %p263 = pneg %p194
        %p264 = pneg %p191
        %s265 = sand.u32 %s181, 1
        %s266 = scalar_lea.sflag [#allocation3], %s265
        %s267 = sand.u32 %s181, 1
        %s268 = smul.addr %s267, 4
        %s269 = scalar_lea.vmem [#allocation2], %s268
        %p270 = scmp.lt.s32.totalorder %s21, 1
        %s271 = scalar_select %p270, %s21, 1
        %s272 = smul.addr %s271, 4
        %s273 = scalar_lea.vmem %s0, %s272
        %v275 = vld [vmem:[%s273] sm:$0x7]
        %v276 = vmul.f32 %v275, 2.0
        %v277 = vmul.f32 %v275, 4.0
        %v278 = vmul.f32 %v275, 8.0
        %v280 = vrot.slane %v276, 5
        %v283 = vrot.slane %v277, 2
        %v286 = vrot.slane %v278, 7
        %vm288 = vcmask 1042432
        %v289 = vsel %vm288, %v275, %v280
        %vm290 = vcmask 1045504
        %v291 = vsel %vm290, %v289, %v283
        %vm292 = vcmask 1040384
        %v293 = vsel %vm292, %v283, %v286
        %v294 = vand.u32 2147483647, %v291
        %vm295 = vcmp.le.f32.partialorder %v294, 0.7853982
        %vm296 = vcmp.lt.s32.totalorder %v291, 0
        %v297 = vand.u32 %v291, 2139095040
        %v298 = vshrl.u32 %v297, 23
        %v299 = vsub.s32 %v298, 127
        %v300 = vand.u32 2147483647, %v291
        %v301 = vand.u32 %v300, 8388607
        %v302 = vor.u32 %v301, 8388608
        %v303 = vsub.s32 0, %v302
        %v304 = vadd.s32 %v299, 1
        %vm305 = vcmp.gt.s32.totalorder %v304, 0
        %v306 = vsel %vm305, %v304, 0
        %v307 = vshrl.u32 %v306, 5
        %v308 = vand.u32 %v306, 31
        %v309 = vsub.s32 32, %v308
        %v310 = vshrl.u32 683565275, %v309
        %v311 = vshll.u32 683565275, %v308
        %v312 = vshrl.u32 2475754826, %v309
        %v313 = vor.u32 %v311, %v312
        %v314 = vshll.u32 2475754826, %v308
        %v315 = vshrl.u32 2131351028, %v309
        %v316 = vor.u32 %v314, %v315
        %v317 = vshll.u32 2131351028, %v308
        %v318 = vshrl.u32 2102212464, %v309
        %v319 = vor.u32 %v317, %v318
        %v320 = vshll.u32 2102212464, %v308
        %v321 = vshrl.u32 920167782, %v309
        %v322 = vor.u32 %v320, %v321
        %v323 = vshll.u32 920167782, %v308
        %v324 = vshrl.u32 1326507024, %v309
        %v325 = vor.u32 %v323, %v324
        %vm326 = vcmp.lt.s32.totalorder %v307, 1
        %vm327 = vcmp.lt.s32.totalorder %v307, 2
        %vm328 = vcmp.lt.s32.totalorder %v307, 3
        %vm329 = vcmp.lt.s32.totalorder %v307, 4
        %v330 = vsel %vm326, %v310, %v313
        %v331 = vsel %vm329, %v319, 2102212464
        %v332 = vsel %vm328, %v316, %v331
        %v333 = vsel %vm327, %v330, %v332
        %v334 = vsel %vm326, %v313, %v316
        %v335 = vsel %vm329, %v322, 920167782
        %v336 = vsel %vm328, %v319, %v335
        %v337 = vsel %vm327, %v334, %v336
        %v338 = vsel %vm326, %v316, %v319
        %v339 = vsel %vm329, %v325, 1326507024
        %v340 = vsel %vm328, %v322, %v339
        %v341 = vsel %vm327, %v338, %v340
        %v342 = vshll.u32 %v302, 8
        %v343 = vmul.u32.u64.compose %v342, %v341
        %v344 = vextract.low.u32 %v343
        %v345 = vextract.high.u32 %v343
        %v346 = vmul.u32.u64.compose %v342, %v337
        %v347 = vextract.low.u32 %v346
        %v348 = vextract.high.u32 %v346
        %v349 = vmul.u32 %v342, %v333
        %v350 = vadd.s32 %v345, %v347
        %vm351 = vc.u32 %v345, %v347
        %v352 = vadd.s32 %v348, 1
        %v353 = vsel %vm351, %v352, %v348
        %v354 = vadd.s32 %v349, %v353
        %v355 = vadd.s32 %v354, 536870912
        %v356 = vshrl.u32 %v355, 30
        %v357 = vshll.u32 %v356, 30
        %v358 = vsub.s32 %v354, %v357
        %vm359 = vcmp.lt.s32.totalorder %v358, 0
        %v360 = vsub.s32 0, %v358
        %v361 = vsel %vm359, %v360, %v358
        %v362 = vclz %v361
        %v363 = vsub.s32 %v362, 2
        %vm364 = vcmp.gt.s32.totalorder 0, %v363
        %v365 = vsel %vm364, 0, %v363
        %v366 = vsub.s32 32, %v365
        %v367 = vshll.u32 %v358, %v365
        %v368 = vshrl.u32 %v350, %v366
        %v369 = vor.u32 %v367, %v368
        %v370 = vsub.s32 4294967266, %v365
        %v371 = vadd.s32 %v370, 127
        %v372 = vshll.u32 %v371, 23
        %v373 = vor.u32 4788187, %v372
        %v374 = vand.u32 2147483647, %v373
        %v376 = vcvt.s32.f32 %v369
        %v377 = vmul.f32 %v376, %v374
        %v378 = vxor.u32 %v377, 2147483648
        %v379 = vsel %vm296, %v378, %v377
        %v380 = vsub.s32 4, %v356
        %v381 = vsel %vm296, %v380, %v356
        %v382 = vsel %vm295, %v291, %v379
        %v383 = vsel %vm295, 0, %v381
        %v384 = vcosq.f32.pop %v382
        %v385 = vsinq.f32.pop %v382
        %vm386 = vweird.f32 %v291
        %v387 = vadd.s32 %v383, 3
        %v388 = vand.u32 %v387, 3
        %vm389 = vcmp.lt.s32.totalorder %v388, 2
        %vm390 = vcmp.eq.s32.totalorder %v388, 0
        %v391 = vxor.u32 %v385, 2147483648
        %v392 = vsel %vm390, %v384, %v391
        %vm393 = vcmp.eq.s32.totalorder %v388, 2
        %v394 = vxor.u32 %v384, 2147483648
        %v395 = vsel %vm393, %v394, %v385
        %v396 = vsel %vm389, %v392, %v395
        %v397 = vsel %vm386, nan, %v396
        %v398 = vand.u32 2147483647, %v293
        %vm399 = vcmp.le.f32.partialorder %v398, 0.7853982
        %vm400 = vcmp.lt.s32.totalorder %v293, 0
        %v401 = vand.u32 %v293, 2139095040
        %v402 = vshrl.u32 %v401, 23
        %v403 = vsub.s32 %v402, 127
        %v404 = vand.u32 2147483647, %v293
        %v405 = vand.u32 %v404, 8388607
        %v406 = vor.u32 %v405, 8388608
        %v407 = vsub.s32 0, %v406
        %v408 = vadd.s32 %v403, 1
        %vm409 = vcmp.gt.s32.totalorder %v408, 0
        %v410 = vsel %vm409, %v408, 0
        %v411 = vshrl.u32 %v410, 5
        %v412 = vand.u32 %v410, 31
        %v413 = vsub.s32 32, %v412
        %v414 = vshrl.u32 683565275, %v413
        %v415 = vshll.u32 683565275, %v412
        %v416 = vshrl.u32 2475754826, %v413
        %v417 = vor.u32 %v415, %v416
        %v418 = vshll.u32 2475754826, %v412
        %v419 = vshrl.u32 2131351028, %v413
        %v420 = vor.u32 %v418, %v419
        %v421 = vshll.u32 2131351028, %v412
        %v422 = vshrl.u32 2102212464, %v413
        %v423 = vor.u32 %v421, %v422
        %v424 = vshll.u32 2102212464, %v412
        %v425 = vshrl.u32 920167782, %v413
        %v426 = vor.u32 %v424, %v425
        %v427 = vshll.u32 920167782, %v412
        %v428 = vshrl.u32 1326507024, %v413
        %v429 = vor.u32 %v427, %v428
        %vm430 = vcmp.lt.s32.totalorder %v411, 1
        %vm431 = vcmp.lt.s32.totalorder %v411, 2
        %vm432 = vcmp.lt.s32.totalorder %v411, 3
        %vm433 = vcmp.lt.s32.totalorder %v411, 4
        %v434 = vsel %vm430, %v414, %v417
        %v435 = vsel %vm433, %v423, 2102212464
        %v436 = vsel %vm432, %v420, %v435
        %v437 = vsel %vm431, %v434, %v436
        %v438 = vsel %vm430, %v417, %v420
        %v439 = vsel %vm433, %v426, 920167782
        %v440 = vsel %vm432, %v423, %v439
        %v441 = vsel %vm431, %v438, %v440
        %v442 = vsel %vm430, %v420, %v423
        %v443 = vsel %vm433, %v429, 1326507024
        %v444 = vsel %vm432, %v426, %v443
        %v445 = vsel %vm431, %v442, %v444
        %v446 = vshll.u32 %v406, 8
        %v447 = vmul.u32.u64.compose %v446, %v445
        %v448 = vextract.low.u32 %v447
        %v449 = vextract.high.u32 %v447
        %v450 = vmul.u32.u64.compose %v446, %v441
        %v451 = vextract.low.u32 %v450
        %v452 = vextract.high.u32 %v450
        %v453 = vmul.u32 %v446, %v437
        %v454 = vadd.s32 %v449, %v451
        %vm455 = vc.u32 %v449, %v451
        %v456 = vadd.s32 %v452, 1
        %v457 = vsel %vm455, %v456, %v452
        %v458 = vadd.s32 %v453, %v457
        %v459 = vadd.s32 %v458, 536870912
        %v460 = vshrl.u32 %v459, 30
        %v461 = vshll.u32 %v460, 30
        %v462 = vsub.s32 %v458, %v461
        %vm463 = vcmp.lt.s32.totalorder %v462, 0
        %v464 = vsub.s32 0, %v462
        %v465 = vsel %vm463, %v464, %v462
        %v466 = vclz %v465
        %v467 = vsub.s32 %v466, 2
        %vm468 = vcmp.gt.s32.totalorder 0, %v467
        %v469 = vsel %vm468, 0, %v467
        %v470 = vsub.s32 32, %v469
        %v471 = vshll.u32 %v462, %v469
        %v472 = vshrl.u32 %v454, %v470
        %v473 = vor.u32 %v471, %v472
        %v474 = vsub.s32 4294967266, %v469
        %v475 = vadd.s32 %v474, 127
        %v476 = vshll.u32 %v475, 23
        %v477 = vor.u32 4788187, %v476
        %v478 = vand.u32 2147483647, %v477
        %v480 = vcvt.s32.f32 %v473
        %v481 = vmul.f32 %v480, %v478
        %v482 = vxor.u32 %v481, 2147483648
        %v483 = vsel %vm400, %v482, %v481
        %v484 = vsub.s32 4, %v460
        %v485 = vsel %vm400, %v484, %v460
        %v486 = vsel %vm399, %v293, %v483
        %v487 = vsel %vm399, 0, %v485
        %v488 = vcosq.f32.pop %v486
        %v489 = vsinq.f32.pop %v486
        %vm490 = vweird.f32 %v293
        %v491 = vadd.s32 %v487, 3
        %v492 = vand.u32 %v491, 3
        %vm493 = vcmp.lt.s32.totalorder %v492, 2
        %vm494 = vcmp.eq.s32.totalorder %v492, 0
        %v495 = vxor.u32 %v489, 2147483648
        %v496 = vsel %vm494, %v488, %v495
        %vm497 = vcmp.eq.s32.totalorder %v492, 2
        %v498 = vxor.u32 %v488, 2147483648
        %v499 = vsel %vm497, %v498, %v489
        %v500 = vsel %vm493, %v496, %v499
        %v501 = vsel %vm490, nan, %v500
        %v502 = vand.u32 2147483647, %v291
        %vm503 = vcmp.le.f32.partialorder %v502, 0.7853982
        %vm504 = vcmp.lt.s32.totalorder %v291, 0
        %v505 = vand.u32 %v291, 2139095040
        %v506 = vshrl.u32 %v505, 23
        %v507 = vsub.s32 %v506, 127
        %v508 = vand.u32 2147483647, %v291
        %v509 = vand.u32 %v508, 8388607
        %v510 = vor.u32 %v509, 8388608
        %v511 = vsub.s32 0, %v510
        %v512 = vadd.s32 %v507, 1
        %vm513 = vcmp.gt.s32.totalorder %v512, 0
        %v514 = vsel %vm513, %v512, 0
        %v515 = vshrl.u32 %v514, 5
        %v516 = vand.u32 %v514, 31
        %v517 = vsub.s32 32, %v516
        %v518 = vshrl.u32 683565275, %v517
        %v519 = vshll.u32 683565275, %v516
        %v520 = vshrl.u32 2475754826, %v517
        %v521 = vor.u32 %v519, %v520
        %v522 = vshll.u32 2475754826, %v516
        %v523 = vshrl.u32 2131351028, %v517
        %v524 = vor.u32 %v522, %v523
        %v525 = vshll.u32 2131351028, %v516
        %v526 = vshrl.u32 2102212464, %v517
        %v527 = vor.u32 %v525, %v526
        %v528 = vshll.u32 2102212464, %v516
        %v529 = vshrl.u32 920167782, %v517
        %v530 = vor.u32 %v528, %v529
        %v531 = vshll.u32 920167782, %v516
        %v532 = vshrl.u32 1326507024, %v517
        %v533 = vor.u32 %v531, %v532
        %vm534 = vcmp.lt.s32.totalorder %v515, 1
        %vm535 = vcmp.lt.s32.totalorder %v515, 2
        %vm536 = vcmp.lt.s32.totalorder %v515, 3
        %vm537 = vcmp.lt.s32.totalorder %v515, 4
        %v538 = vsel %vm534, %v518, %v521
        %v539 = vsel %vm537, %v527, 2102212464
        %v540 = vsel %vm536, %v524, %v539
        %v541 = vsel %vm535, %v538, %v540
        %v542 = vsel %vm534, %v521, %v524
        %v543 = vsel %vm537, %v530, 920167782
        %v544 = vsel %vm536, %v527, %v543
        %v545 = vsel %vm535, %v542, %v544
        %v546 = vsel %vm534, %v524, %v527
        %v547 = vsel %vm537, %v533, 1326507024
        %v548 = vsel %vm536, %v530, %v547
        %v549 = vsel %vm535, %v546, %v548
        %v550 = vshll.u32 %v510, 8
        %v551 = vmul.u32.u64.compose %v550, %v549
        %v552 = vextract.low.u32 %v551
        %v553 = vextract.high.u32 %v551
        %v554 = vmul.u32.u64.compose %v550, %v545
        %v555 = vextract.low.u32 %v554
        %v556 = vextract.high.u32 %v554
        %v557 = vmul.u32 %v550, %v541
        %v558 = vadd.s32 %v553, %v555
        %vm559 = vc.u32 %v553, %v555
        %v560 = vadd.s32 %v556, 1
        %v561 = vsel %vm559, %v560, %v556
        %v562 = vadd.s32 %v557, %v561
        %v563 = vadd.s32 %v562, 536870912
        %v564 = vshrl.u32 %v563, 30
        %v565 = vshll.u32 %v564, 30
        %v566 = vsub.s32 %v562, %v565
        %vm567 = vcmp.lt.s32.totalorder %v566, 0
        %v568 = vsub.s32 0, %v566
        %v569 = vsel %vm567, %v568, %v566
        %v570 = vclz %v569
        %v571 = vsub.s32 %v570, 2
        %vm572 = vcmp.gt.s32.totalorder 0, %v571
        %v573 = vsel %vm572, 0, %v571
        %v574 = vsub.s32 32, %v573
        %v575 = vshll.u32 %v566, %v573
        %v576 = vshrl.u32 %v558, %v574
        %v577 = vor.u32 %v575, %v576
        %v578 = vsub.s32 4294967266, %v573
        %v579 = vadd.s32 %v578, 127
        %v580 = vshll.u32 %v579, 23
        %v581 = vor.u32 4788187, %v580
        %v582 = vand.u32 2147483647, %v581
        %v584 = vcvt.s32.f32 %v577
        %v585 = vmul.f32 %v584, %v582
        %v586 = vxor.u32 %v585, 2147483648
        %v587 = vsel %vm504, %v586, %v585
        %v588 = vsub.s32 4, %v564
        %v589 = vsel %vm504, %v588, %v564
        %v590 = vsel %vm503, %v291, %v587
        %v591 = vsel %vm503, 0, %v589
        %v592 = vcosq.f32.pop %v590
        %v593 = vsinq.f32.pop %v590
        %vm594 = vweird.f32 %v291
        %v595 = vand.u32 %v591, 3
        %vm596 = vcmp.lt.s32.totalorder %v595, 2
        %vm597 = vcmp.eq.s32.totalorder %v595, 0
        %v598 = vxor.u32 %v593, 2147483648
        %v599 = vsel %vm597, %v592, %v598
        %vm600 = vcmp.eq.s32.totalorder %v595, 2
        %v601 = vxor.u32 %v592, 2147483648
        %v602 = vsel %vm600, %v601, %v593
        %v603 = vsel %vm596, %v599, %v602
        %v604 = vsel %vm594, nan, %v603
        %v605 = vand.u32 2147483647, %v293
        %vm606 = vcmp.le.f32.partialorder %v605, 0.7853982
        %vm607 = vcmp.lt.s32.totalorder %v293, 0
        %v608 = vand.u32 %v293, 2139095040
        %v609 = vshrl.u32 %v608, 23
        %v610 = vsub.s32 %v609, 127
        %v611 = vand.u32 2147483647, %v293
        %v612 = vand.u32 %v611, 8388607
        %v613 = vor.u32 %v612, 8388608
        %v614 = vsub.s32 0, %v613
        %v615 = vadd.s32 %v610, 1
        %vm616 = vcmp.gt.s32.totalorder %v615, 0
        %v617 = vsel %vm616, %v615, 0
        %v618 = vshrl.u32 %v617, 5
        %v619 = vand.u32 %v617, 31
        %v620 = vsub.s32 32, %v619
        %v621 = vshrl.u32 683565275, %v620
        %v622 = vshll.u32 683565275, %v619
        %v623 = vshrl.u32 2475754826, %v620
        %v624 = vor.u32 %v622, %v623
        %v625 = vshll.u32 2475754826, %v619
        %v626 = vshrl.u32 2131351028, %v620
        %v627 = vor.u32 %v625, %v626
        %v628 = vshll.u32 2131351028, %v619
        %v629 = vshrl.u32 2102212464, %v620
        %v630 = vor.u32 %v628, %v629
        %v631 = vshll.u32 2102212464, %v619
        %v632 = vshrl.u32 920167782, %v620
        %v633 = vor.u32 %v631, %v632
        %v634 = vshll.u32 920167782, %v619
        %v635 = vshrl.u32 1326507024, %v620
        %v636 = vor.u32 %v634, %v635
        %vm637 = vcmp.lt.s32.totalorder %v618, 1
        %vm638 = vcmp.lt.s32.totalorder %v618, 2
        %vm639 = vcmp.lt.s32.totalorder %v618, 3
        %vm640 = vcmp.lt.s32.totalorder %v618, 4
        %v641 = vsel %vm637, %v621, %v624
        %v642 = vsel %vm640, %v630, 2102212464
        %v643 = vsel %vm639, %v627, %v642
        %v644 = vsel %vm638, %v641, %v643
        %v645 = vsel %vm637, %v624, %v627
        %v646 = vsel %vm640, %v633, 920167782
        %v647 = vsel %vm639, %v630, %v646
        %v648 = vsel %vm638, %v645, %v647
        %v649 = vsel %vm637, %v627, %v630
        %v650 = vsel %vm640, %v636, 1326507024
        %v651 = vsel %vm639, %v633, %v650
        %v652 = vsel %vm638, %v649, %v651
        %v653 = vshll.u32 %v613, 8
        %v654 = vmul.u32.u64.compose %v653, %v652
        %v655 = vextract.low.u32 %v654
        %v656 = vextract.high.u32 %v654
        %v657 = vmul.u32.u64.compose %v653, %v648
        %v658 = vextract.low.u32 %v657
        %v659 = vextract.high.u32 %v657
        %v660 = vmul.u32 %v653, %v644
        %v661 = vadd.s32 %v656, %v658
        %vm662 = vc.u32 %v656, %v658
        %v663 = vadd.s32 %v659, 1
        %v664 = vsel %vm662, %v663, %v659
        %v665 = vadd.s32 %v660, %v664
        %v666 = vadd.s32 %v665, 536870912
        %v667 = vshrl.u32 %v666, 30
        %v668 = vshll.u32 %v667, 30
        %v669 = vsub.s32 %v665, %v668
        %vm670 = vcmp.lt.s32.totalorder %v669, 0
        %v671 = vsub.s32 0, %v669
        %v672 = vsel %vm670, %v671, %v669
        %v673 = vclz %v672
        %v674 = vsub.s32 %v673, 2
        %vm675 = vcmp.gt.s32.totalorder 0, %v674
        %v676 = vsel %vm675, 0, %v674
        %v677 = vsub.s32 32, %v676
        %v678 = vshll.u32 %v669, %v676
        %v679 = vshrl.u32 %v661, %v677
        %v680 = vor.u32 %v678, %v679
        %v681 = vsub.s32 4294967266, %v676
        %v682 = vadd.s32 %v681, 127
        %v683 = vshll.u32 %v682, 23
        %v684 = vor.u32 4788187, %v683
        %v685 = vand.u32 2147483647, %v684
        %v687 = vcvt.s32.f32 %v680
        %v688 = vmul.f32 %v687, %v685
        %v689 = vxor.u32 %v688, 2147483648
        %v690 = vsel %vm607, %v689, %v688
        %v691 = vsub.s32 4, %v667
        %v692 = vsel %vm607, %v691, %v667
        %v693 = vsel %vm606, %v293, %v690
        %v694 = vsel %vm606, 0, %v692
        %v695 = vcosq.f32.pop %v693
        %v696 = vsinq.f32.pop %v693
        %vm697 = vweird.f32 %v293
        %v698 = vand.u32 %v694, 3
        %vm699 = vcmp.lt.s32.totalorder %v698, 2
        %vm700 = vcmp.eq.s32.totalorder %v698, 0
        %v701 = vxor.u32 %v696, 2147483648
        %v702 = vsel %vm700, %v695, %v701
        %vm703 = vcmp.eq.s32.totalorder %v698, 2
        %v704 = vxor.u32 %v695, 2147483648
        %v705 = vsel %vm703, %v704, %v696
        %v706 = vsel %vm699, %v702, %v705
        %v707 = vsel %vm697, nan, %v706
        %vm710 = vcmask 1043456
        %v711 = vrot.slane %v604, 4
        %v712 = vrot.slane %v707, 4
        %v713 = vsel %vm710, %v711, %v712
        %v716 = vsel %vm710, %v501, %v711
        %v717 = vpack.c.bf16 %v716, %v397
        %v718 = vpack.c.bf16 %v713, %v713
        %v719 = vld [vmem:[%s1] sm:$0xf]
        %v720 = vld [vmem:[%s1 + $0x4] sm:$0xf]
        %v721 = vld [vmem:[%s1 + $0x8] sm:$0xf]
        %v722 = vld [vmem:[%s1 + $0xc] sm:$0xf]
        %v723 = vld [vmem:[%s1 + $0x10] sm:$0xf]
        %v724 = vld [vmem:[%s1 + $0x14] sm:$0xf]
        %v725 = vld [vmem:[%s1 + $0x18] sm:$0xf]
        %v726 = vld [vmem:[%s1 + $0x1c] sm:$0xf]
        %v727 = vld [vmem:[%s2] sm:$0xff]
        %v728 = vld [vmem:[%s2 + $0x8] sm:$0xff]
        %v729 = vld [vmem:[%s2 + $0x10] sm:$0xff]
        %v730 = vld [vmem:[%s2 + $0x18] sm:$0xff]
        %v731 = vld [vmem:[%s2 + $0x20] sm:$0xff]
        %v732 = vld [vmem:[%s2 + $0x28] sm:$0xff]
        %v733 = vld [vmem:[%s2 + $0x30] sm:$0xff]
        %v734 = vld [vmem:[%s2 + $0x38] sm:$0xff]
        %736 = vset.pattern.permute.xlu0 0
        %737 = vperm.xlu0 %736, %v727
        %v738 = vpop.permute.xlu0 %737
        %741 = vset.pattern.permute.xlu0 0
        %742 = vperm.xlu0 %741, %v728
        %v743 = vpop.permute.xlu0 %742
        %746 = vset.pattern.permute.xlu0 0
        %747 = vperm.xlu0 %746, %v729
        %v748 = vpop.permute.xlu0 %747
        %751 = vset.pattern.permute.xlu0 0
        %752 = vperm.xlu0 %751, %v730
        %v753 = vpop.permute.xlu0 %752
        %756 = vset.pattern.permute.xlu0 0
        %757 = vperm.xlu0 %756, %v731
        %v758 = vpop.permute.xlu0 %757
        %761 = vset.pattern.permute.xlu0 0
        %762 = vperm.xlu0 %761, %v732
        %v763 = vpop.permute.xlu0 %762
        %766 = vset.pattern.permute.xlu0 0
        %767 = vperm.xlu0 %766, %v733
        %v768 = vpop.permute.xlu0 %767
        %771 = vset.pattern.permute.xlu0 0
        %772 = vperm.xlu0 %771, %v734
        %v773 = vpop.permute.xlu0 %772
        %v783 = vunpack.c.l.b16 %v719
        %v784 = vunpack.c.l.b16 %v720
        %v785 = vunpack.c.l.b16 %v721
        %v786 = vunpack.c.l.b16 %v722
        %v787 = vunpack.c.l.b16 %v723
        %v788 = vunpack.c.l.b16 %v724
        %v789 = vunpack.c.l.b16 %v725
        %v790 = vunpack.c.l.b16 %v726
        %v791 = vpack.c.b16 %v784, %v783
        %v792 = vpack.c.b16 %v786, %v785
        %v793 = vpack.c.b16 %v788, %v787
        %v794 = vpack.c.b16 %v790, %v789
        %vm795 = vcmask 195584
        %v797 = vsel %vm795, %v791, 0
        %v800 = vsel %vm795, %v792, 0
        %v803 = vsel %vm795, %v793, 0
        %v806 = vsel %vm795, %v794, 0
        %v809 = vsel %vm710, %v718, 0
        %811 = vmatprep.subr.bf16.mxu0 0
        %812 = vmatpush1.bf16.msra.mxu0 %v717
        %813 = vmatprep.subr.bf16.mxu0 0
        %814 = vmatpush1.bf16.msra.mxu0 %v809
        %815 = vmatprep.subr.bf16.mxu0 0
        %816 = vmatpush1.bf16.msra.mxu0 0
        %817 = vmatprep.subr.bf16.mxu0 0
        %818 = vmatpush1.bf16.msra.mxu0 0
        %819 = vmatprep.subr.bf16.mxu0 0
        %820 = vmatpush1.bf16.msra.mxu0 0
        %821 = vmatprep.subr.bf16.mxu0 0
        %822 = vmatpush1.bf16.msra.mxu0 0
        %823 = vmatprep.subr.bf16.mxu0 0
        %824 = vmatpush1.bf16.msra.mxu0 0
        %825 = vmatprep.subr.bf16.mxu0 0
        %826 = vmatpush1.bf16.msra.mxu0 0
        %827 = vmatprep.subr.bf16.mxu0 0
        %828 = vmatpush1.bf16.msra.mxu0 0
        %829 = vmatprep.subr.bf16.mxu0 0
        %830 = vmatpush1.bf16.msra.mxu0 0
        %831 = vmatprep.subr.bf16.mxu0 0
        %832 = vmatpush1.bf16.msra.mxu0 0
        %833 = vmatprep.subr.bf16.mxu0 0
        %834 = vmatpush1.bf16.msra.mxu0 0
        %835 = vmatprep.subr.bf16.mxu0 0
        %836 = vmatpush1.bf16.msra.mxu0 0
        %837 = vmatprep.subr.bf16.mxu0 0
        %838 = vmatpush1.bf16.msra.mxu0 0
        %839 = vmatprep.subr.bf16.mxu0 0
        %840 = vmatpush1.bf16.msra.mxu0 0
        %841 = vmatprep.subr.bf16.mxu0 0
        %842 = vmatpush1.bf16.msra.mxu0 0
        %843 = vmatprep.mubr.bf16.mxu0 0
        %844 = vmatmul.mubr.bf16.gmra.mrb[0].mxu0 %v797
        %v845 = vpop.f32.mrb[0].mxu0
        %v846 = vadd.f32 %v738, %v845
        %v847 = vpop.f32.mrb[0].mxu0
        %v848 = vpop.f32.mrb[0].mxu0
        %v849 = vadd.f32 %v743, %v848
        %v850 = vpop.f32.mrb[0].mxu0
        %851 = vmatprep.mubr.bf16.mxu0 0
        %852 = vmatmul.mubr.bf16.gmra.mrb[0].mxu0 %v800
        %v853 = vpop.f32.mrb[0].mxu0
        %v854 = vadd.f32 %v748, %v853
        %v855 = vpop.f32.mrb[0].mxu0
        %v856 = vpop.f32.mrb[0].mxu0
        %v857 = vadd.f32 %v753, %v856
        %v858 = vpop.f32.mrb[0].mxu0
        %859 = vmatprep.mubr.bf16.mxu0 0
        %860 = vmatmul.mubr.bf16.gmra.mrb[0].mxu0 %v803
        %v861 = vpop.f32.mrb[0].mxu0
        %v862 = vadd.f32 %v758, %v861
        %v863 = vpop.f32.mrb[0].mxu0
        %v864 = vpop.f32.mrb[0].mxu0
        %v865 = vadd.f32 %v763, %v864
        %v866 = vpop.f32.mrb[0].mxu0
        %867 = vmatprep.mubr.bf16.mxu0 0
        %868 = vmatmul.mubr.bf16.gmra.mrb[0].mxu0 %v806
        %v869 = vpop.f32.mrb[0].mxu0
        %v870 = vadd.f32 %v768, %v869
        %v871 = vpop.f32.mrb[0].mxu0
        %v872 = vpop.f32.mrb[0].mxu0
        %v873 = vadd.f32 %v773, %v872
        %v874 = vpop.f32.mrb[0].mxu0
        %875 = vdwg.mxu0
        %v876 = vmax.f32 %v846, 0.0
        %v877 = vmax.f32 %v849, 0.0
        %v878 = vmax.f32 %v854, 0.0
        %v879 = vmax.f32 %v857, 0.0
        %v880 = vmax.f32 %v862, 0.0
        %v881 = vmax.f32 %v865, 0.0
        %v882 = vmax.f32 %v870, 0.0
        %v883 = vmax.f32 %v873, 0.0
        %v884 = vpack.c.bf16 %v877, %v876
        %v885 = vpack.c.bf16 %v879, %v878
        %v886 = vpack.c.bf16 %v881, %v880
        %v887 = vpack.c.bf16 %v883, %v882
        %v888 = vld [vmem:[%s3] sm:$0xf]
        %v889 = vld [vmem:[%s3 + $0x4] sm:$0xf]
        %v890 = vld [vmem:[%s3 + $0x8] sm:$0xf]
        %v891 = vld [vmem:[%s3 + $0xc] sm:$0xf]
        %v892 = vld [vmem:[%s3 + $0x10] sm:$0xf]
        %v893 = vld [vmem:[%s3 + $0x14] sm:$0xf]
        %v894 = vld [vmem:[%s3 + $0x18] sm:$0xf]
        %v895 = vld [vmem:[%s3 + $0x1c] sm:$0xf]
        %v896 = vld [vmem:[%s4] sm:$0xff]
        %v897 = vld [vmem:[%s4 + $0x8] sm:$0xff]
        %v898 = vld [vmem:[%s4 + $0x10] sm:$0xff]
        %v899 = vld [vmem:[%s4 + $0x18] sm:$0xff]
        %v900 = vld [vmem:[%s4 + $0x20] sm:$0xff]
        %v901 = vld [vmem:[%s4 + $0x28] sm:$0xff]
        %v902 = vld [vmem:[%s4 + $0x30] sm:$0xff]
        %v903 = vld [vmem:[%s4 + $0x38] sm:$0xff]
        %905 = vset.pattern.permute.xlu0 0
        %906 = vperm.xlu0 %905, %v896
        %v907 = vpop.permute.xlu0 %906
        %910 = vset.pattern.permute.xlu0 0
        %911 = vperm.xlu0 %910, %v897
        %v912 = vpop.permute.xlu0 %911
        %915 = vset.pattern.permute.xlu0 0
        %916 = vperm.xlu0 %915, %v898
        %v917 = vpop.permute.xlu0 %916
        %920 = vset.pattern.permute.xlu0 0
        %921 = vperm.xlu0 %920, %v899
        %v922 = vpop.permute.xlu0 %921
        %925 = vset.pattern.permute.xlu0 0
        %926 = vperm.xlu0 %925, %v900
        %v927 = vpop.permute.xlu0 %926
        %930 = vset.pattern.permute.xlu0 0
        %931 = vperm.xlu0 %930, %v901
        %v932 = vpop.permute.xlu0 %931
        %935 = vset.pattern.permute.xlu0 0
        %936 = vperm.xlu0 %935, %v902
        %v937 = vpop.permute.xlu0 %936
        %940 = vset.pattern.permute.xlu0 0
        %941 = vperm.xlu0 %940, %v903
        %v942 = vpop.permute.xlu0 %941
        %v952 = vunpack.c.l.b16 %v888
        %v953 = vunpack.c.l.b16 %v889
        %v954 = vunpack.c.l.b16 %v890
        %v955 = vunpack.c.l.b16 %v891
        %v956 = vunpack.c.l.b16 %v892
        %v957 = vunpack.c.l.b16 %v893
        %v958 = vunpack.c.l.b16 %v894
        %v959 = vunpack.c.l.b16 %v895
        %v960 = vpack.c.b16 %v953, %v952
        %v961 = vpack.c.b16 %v955, %v954
        %v962 = vpack.c.b16 %v957, %v956
        %v963 = vpack.c.b16 %v959, %v958
        %vm964 = vcmask 523264
        %v966 = vsel %vm964, %v960, 0
        %v969 = vsel %vm964, %v961, 0
        %v972 = vsel %vm964, %v962, 0
        %v975 = vsel %vm964, %v963, 0
        %977 = vmatprep.subr.bf16.mxu0 0
        %978 = vmatpush1.bf16.msra.mxu0 %v884
        %979 = vmatprep.subr.bf16.mxu0 0
        %980 = vmatpush1.bf16.msra.mxu0 %v885
        %981 = vmatprep.subr.bf16.mxu0 0
        %982 = vmatpush1.bf16.msra.mxu0 %v886
        %983 = vmatprep.subr.bf16.mxu0 0
        %984 = vmatpush1.bf16.msra.mxu0 %v887
        %985 = vmatprep.subr.bf16.mxu0 0
        %986 = vmatpush1.bf16.msra.mxu0 0
        %987 = vmatprep.subr.bf16.mxu0 0
        %988 = vmatpush1.bf16.msra.mxu0 0
        %989 = vmatprep.subr.bf16.mxu0 0
        %990 = vmatpush1.bf16.msra.mxu0 0
        %991 = vmatprep.subr.bf16.mxu0 0
        %992 = vmatpush1.bf16.msra.mxu0 0
        %993 = vmatprep.subr.bf16.mxu0 0
        %994 = vmatpush1.bf16.msra.mxu0 0
        %995 = vmatprep.subr.bf16.mxu0 0
        %996 = vmatpush1.bf16.msra.mxu0 0
        %997 = vmatprep.subr.bf16.mxu0 0
        %998 = vmatpush1.bf16.msra.mxu0 0
        %999 = vmatprep.subr.bf16.mxu0 0
        %1000 = vmatpush1.bf16.msra.mxu0 0
        %1001 = vmatprep.subr.bf16.mxu0 0
        %1002 = vmatpush1.bf16.msra.mxu0 0
        %1003 = vmatprep.subr.bf16.mxu0 0
        %1004 = vmatpush1.bf16.msra.mxu0 0
        %1005 = vmatprep.subr.bf16.mxu0 0
        %1006 = vmatpush1.bf16.msra.mxu0 0
        %1007 = vmatprep.subr.bf16.mxu0 0
        %1008 = vmatpush1.bf16.msra.mxu0 0
        %1009 = vmatprep.mubr.bf16.mxu0 0
        %1010 = vmatmul.mubr.bf16.gmra.mrb[0].mxu0 %v966
        %v1011 = vpop.f32.mrb[0].mxu0
        %v1012 = vadd.f32 %v907, %v1011
        %v1013 = vpop.f32.mrb[0].mxu0
        %v1014 = vpop.f32.mrb[0].mxu0
        %v1015 = vadd.f32 %v912, %v1014
        %v1016 = vpop.f32.mrb[0].mxu0
        %1017 = vmatprep.mubr.bf16.mxu0 0
        %1018 = vmatmul.mubr.bf16.gmra.mrb[0].mxu0 %v969
        %v1019 = vpop.f32.mrb[0].mxu0
        %v1020 = vadd.f32 %v917, %v1019
        %v1021 = vpop.f32.mrb[0].mxu0
        %v1022 = vpop.f32.mrb[0].mxu0
        %v1023 = vadd.f32 %v922, %v1022
        %v1024 = vpop.f32.mrb[0].mxu0
        %1025 = vmatprep.mubr.bf16.mxu0 0
        %1026 = vmatmul.mubr.bf16.gmra.mrb[0].mxu0 %v972
        %v1027 = vpop.f32.mrb[0].mxu0
        %v1028 = vadd.f32 %v927, %v1027
        %v1029 = vpop.f32.mrb[0].mxu0
        %v1030 = vpop.f32.mrb[0].mxu0
        %v1031 = vadd.f32 %v932, %v1030
        %v1032 = vpop.f32.mrb[0].mxu0
        %1033 = vmatprep.mubr.bf16.mxu0 0
        %1034 = vmatmul.mubr.bf16.gmra.mrb[0].mxu0 %v975
        %v1035 = vpop.f32.mrb[0].mxu0
        %v1036 = vadd.f32 %v937, %v1035
        %v1037 = vpop.f32.mrb[0].mxu0
        %v1038 = vpop.f32.mrb[0].mxu0
        %v1039 = vadd.f32 %v942, %v1038
        %v1040 = vpop.f32.mrb[0].mxu0
        %1041 = vdwg.mxu0
        %v1042 = vmax.f32 %v1012, 0.0
        %v1043 = vmax.f32 %v1015, 0.0
        %v1044 = vmax.f32 %v1020, 0.0
        %v1045 = vmax.f32 %v1023, 0.0
        %v1046 = vmax.f32 %v1028, 0.0
        %v1047 = vmax.f32 %v1031, 0.0
        %v1048 = vmax.f32 %v1036, 0.0
        %v1049 = vmax.f32 %v1039, 0.0
        %v1050 = vpack.c.bf16 %v1043, %v1042
        %v1051 = vpack.c.bf16 %v1045, %v1044
        %v1052 = vpack.c.bf16 %v1047, %v1046
        %v1053 = vpack.c.bf16 %v1049, %v1048
        %v1054 = vld [vmem:[%s5] sm:$0x3]
        %v1055 = vld [vmem:[%s6] sm:$0xf]
        %1057 = vset.pattern.permute.xlu0 0
        %1058 = vperm.xlu0 %1057, %v1055
        %v1059 = vpop.permute.xlu0 %1058
        %v1062 = vsel %vm964, %v1054, 0
        %1064 = vmatprep.subr.bf16.mxu0 0
        %1065 = vmatpush1.bf16.msra.mxu0 %v1050
        %1066 = vmatprep.subr.bf16.mxu0 0
        %1067 = vmatpush1.bf16.msra.mxu0 %v1051
        %1068 = vmatprep.subr.bf16.mxu0 0
        %1069 = vmatpush1.bf16.msra.mxu0 %v1052
        %1070 = vmatprep.subr.bf16.mxu0 0
        %1071 = vmatpush1.bf16.msra.mxu0 %v1053
        %1072 = vmatprep.subr.bf16.mxu0 0
        %1073 = vmatpush1.bf16.msra.mxu0 0
        %1074 = vmatprep.subr.bf16.mxu0 0
        %1075 = vmatpush1.bf16.msra.mxu0 0
        %1076 = vmatprep.subr.bf16.mxu0 0
        %1077 = vmatpush1.bf16.msra.mxu0 0
        %1078 = vmatprep.subr.bf16.mxu0 0
        %1079 = vmatpush1.bf16.msra.mxu0 0
        %1080 = vmatprep.subr.bf16.mxu0 0
        %1081 = vmatpush1.bf16.msra.mxu0 0
        %1082 = vmatprep.subr.bf16.mxu0 0
        %1083 = vmatpush1.bf16.msra.mxu0 0
        %1084 = vmatprep.subr.bf16.mxu0 0
        %1085 = vmatpush1.bf16.msra.mxu0 0
        %1086 = vmatprep.subr.bf16.mxu0 0
        %1087 = vmatpush1.bf16.msra.mxu0 0
        %1088 = vmatprep.subr.bf16.mxu0 0
        %1089 = vmatpush1.bf16.msra.mxu0 0
        %1090 = vmatprep.subr.bf16.mxu0 0
        %1091 = vmatpush1.bf16.msra.mxu0 0
        %1092 = vmatprep.subr.bf16.mxu0 0
        %1093 = vmatpush1.bf16.msra.mxu0 0
        %1094 = vmatprep.subr.bf16.mxu0 0
        %1095 = vmatpush1.bf16.msra.mxu0 0
        %1096 = vmatprep.mubr.bf16.mxu0 0
        %1097 = vmatmul.mubr.bf16.gmra.mrb[0].mxu0 %v1062
        %v1098 = vpop.f32.mrb[0].mxu0
        %v1099 = vadd.f32 %v1059, %v1098
        %v1100 = vpop.f32.mrb[0].mxu0
        %v1101 = vpop.f32.mrb[0].mxu0
        %v1102 = vpop.f32.mrb[0].mxu0
        %1103 = vdwg.mxu0
        %1104 = vst [vmem:[%s269] sm:$0xf] %v1099
        %s1105 = sand.u32 %s181, 1
        %s1106 = scalar_lea.sflag [#allocation3], %s1105
        %s1107 = sand.u32 %s181, 1
        %s1108 = smul.addr %s1107, 4
        %s1109 = scalar_lea.vmem [#allocation2], %s1108
        // Predicated region
        $region49: #{tpu_custom_call.1} parent=47 // pred_check
          %p1110 = pneg %p191
        $region50: #{tpu_custom_call.1} parent=47 // pred_check_branch
          %1112 = sbr.rel (%p1110) target = $region52
        $region51: #{tpu_custom_call.1} parent=47 // pred_region
          %s1114 = ssub.s32 64, 64
          %1115 = vsyncadd %s1106, %s1114
          %s1116 = smul.addr %s21, 64
          %s1117 = scalar_lea.hbm %s7, %s1116
          %s1119 = sshll.u32 %s1109, 4
          %s1120 = int_to_ptr.vmem [resolvable:$true] %s1119
          %1122 = dma.vmem_to_hbm [thread:$0]  %s1120, 64, %s1117, %s1106
        $region52: #{tpu_custom_call.1} parent=47 // pred_fallthru
          _
      $region48: #{tpu_custom_call.1} parent=5 // pred_fallthru
        _
      %p1123 = scmp.le.s32.totalorder 2, %s16
      // Predicated region
      $region53: #{tpu_custom_call.1} parent=5 // pred_check
        %p1124 = pneg %p1123
      $region54: #{tpu_custom_call.1} parent=5 // pred_check_branch
        %1126 = sbr.rel (%p1124) target = $region56
      $region55: #{tpu_custom_call.1} parent=5 // pred_region
        %s1127 = ssub.s32 %s16, 2
        // Predicated region
        $region57: #{tpu_custom_call.1} parent=55 // pred_check
          %p1128 = pneg %p197
        $region58: #{tpu_custom_call.1} parent=55 // pred_check_branch
          %1130 = sbr.rel (%p1128) target = $region60
        $region59: #{tpu_custom_call.1} parent=55 // pred_region
          %s1131 = sand.u32 %s182, 1
          %s1132 = scalar_lea.sflag [#allocation3], %s1131
          %s1133 = sand.u32 %s182, 1
          %s1134 = smul.addr %s1133, 4
          %s1135 = scalar_lea.vmem [#allocation2], %s1134
          %1136 = dma.done %s1132, 64
        $region60: #{tpu_custom_call.1} parent=55 // pred_fallthru
          _
      $region56: #{tpu_custom_call.1} parent=5 // pred_fallthru
        _
    $region6: #{tpu_custom_call.1} parent=1 // loop_footer
      %s20 = sadd.s32 1, %s16
    $region7: #{tpu_custom_call.1} parent=1 // loop_footer_branch
      %15 = sbr.rel target = $region3
    $region8: #{tpu_custom_call.1} parent=1 // loop_exit
      _
    %1137 = vsyncpa [#allocation3], 1
    %s1138 = scalar_lea.sflag [#allocation3], 1
    %1139 = vsyncpa %s1138, 1

</llo_original>
